<compile_context>
chip_gen: v5e
topology: v5e:2x2
jax: 0.10.0
libtpu: 0.0.40
codegen_flags: <defaults>
</compile_context>

<pallas_src>
import functools

import jax
import jax.numpy as jnp
from jax.experimental import pallas as pl
from jax.experimental.pallas import tpu as pltpu

WEIGHT = 1.0   # Critic.__init__ default
POWER = 1.0    # Critic.__init__ default

_TARGET_BLOCK_BYTES = 2 << 20   # ~2 MiB of real trajectory data per grid step
_MIN_GRID_STEPS = 8             # keep the DMA pipeline / v7x megacore fed


def _path_length_kernel(traj_ref, out_ref, *, t_steps):
    # traj_ref: (kb, C*T) block in VMEM; each row is [x(T) | y(T) | theta(T)...]
    # out_ref : (1, kb) float32 lane-dense per-trajectory path-length cost
    x = traj_ref[:, 0:t_steps].astype(jnp.float32)             # (kb, T)
    y = traj_ref[:, t_steps:2 * t_steps].astype(jnp.float32)   # (kb, T)
    dx = x[:, 1:] - x[:, :-1]                                   # (kb, T-1)
    dy = y[:, 1:] - y[:, :-1]                                   # (kb, T-1)
    cost = jnp.sum(dx * dx + dy * dy, axis=-1)                  # (kb,)
    out_ref[...] = cost[None, :]                                # dense (1, kb) store


def _pick_kb(K, row_bytes, block_k=None):
    """K-tile: ~_TARGET_BLOCK_BYTES per block, >= _MIN_GRID_STEPS steps at large K,
    and a multiple of 128 whenever kb < K (lane-tiling rule for the (1, kb) output)."""
    if block_k is not None:
        kb = min(int(block_k), K)
    elif K * row_bytes <= _TARGET_BLOCK_BYTES:
        kb = K                                      # one small block is cheapest
    else:
        by_bytes = max(128, _TARGET_BLOCK_BYTES // row_bytes)
        by_steps = max(128, pl.cdiv(K, _MIN_GRID_STEPS))
        kb = min(by_bytes, by_steps, K)
    if kb < K:
        kb = max(128, (kb // 128) * 128)
        kb = min(kb, K)
    return kb


def path_length_critic(trajectory, goal_pose=None, control=None, *, block_k=None):
    """trajectory: (K, C, T). goal_pose / control are unused (as in the torch module)."""
    K, C, T = trajectory.shape
    row_elems = C * T
    row_bytes = row_elems * jnp.dtype(trajectory.dtype).itemsize

    # Free layout change: trailing (C, T) dims are contiguous, so this is a
    # bitcast-reshape, not a copy. Rows become lane-dense inside the kernel.
    traj_2d = trajectory.reshape(K, row_elems)

    kb = _pick_kb(K, row_bytes, block_k)
    num_steps = pl.cdiv(K, kb)

    if num_steps > 1:
        in_spec = pl.BlockSpec((kb, row_elems), lambda i: (i, 0),
                               pipeline_mode=pl.Buffered(3))
    else:
        in_spec = pl.BlockSpec((kb, row_elems), lambda i: (i, 0))

    cost_row = pl.pallas_call(
        functools.partial(_path_length_kernel, t_steps=T),
        out_shape=jax.ShapeDtypeStruct((1, K), jnp.float32),
        grid=(num_steps,),
        in_specs=[in_spec],
        out_specs=pl.BlockSpec((1, kb), lambda i: (0, i)),
        compiler_params=pltpu.CompilerParams(
            dimension_semantics=("parallel",)),     # megacore sharding on v7x
    )(traj_2d)

    # Global-max normalization + Critic.__call__ epilogue: tiny (K,)-sized XLA
    # ops, hoisted out of the kernel so K can be tiled and the ragged last
    # block needs no lane masking.  NOTE: like the PyTorch reference, this
    # yields NaN if every cost is 0 (0/0).
    cost = cost_row.reshape(K, 1)
    result = cost / jnp.max(cost)
    if WEIGHT != 1.0:
        result = WEIGHT * result
    if POWER != 1.0:
        result = result ** POWER
    return result


def _reference(trajectory):
    t = trajectory.astype(jnp.float32)
    dx = t[:, 0, 1:] - t[:, 0, :-1]
    dy = t[:, 1, 1:] - t[:, 1, :-1]
    cost = jnp.sum(dx * dx + dy * dy, axis=-1, keepdims=True)
    result = cost / jnp.max(cost)
    if WEIGHT != 1.0:
        result = WEIGHT * result
    if POWER != 1.0:
        result = result ** POWER
    return result


if __name__ == "__main__":
    key = jax.random.PRNGKey(0)
    k1, k2, k3, k4 = jax.random.split(key, 4)

    # Small shapes consistent with the module: K rollouts, C=3 state dims
    # (x, y, theta), T timesteps.
    K, C, T = 8, 3, 16
    trajectory = jax.random.normal(k1, (K, C, T), dtype=jnp.float32)
    goal_pose = jax.random.normal(k2, (3,), dtype=jnp.float32)       # unused
    control = jax.random.normal(k3, (K, 2, T), dtype=jnp.float32)    # unused

    out = jax.block_until_ready(path_length_critic(trajectory, goal_pose, control))
    ref = _reference(trajectory)
    assert out.shape == (K, 1), out.shape
    assert out.dtype == jnp.float32
    assert jnp.allclose(out, ref, atol=1e-5, rtol=1e-5)

    # Tiled + ragged-last-block path: exercises the 128-multiple K tile,
    # Buffered(3) input pipelining and Pallas edge-block masking.
    K2 = 1000
    traj2 = jax.random.normal(k4, (K2, C, T), dtype=jnp.float32)
    out2 = jax.block_until_ready(path_length_critic(traj2, block_k=256))
    ref2 = _reference(traj2)
    assert out2.shape == (K2, 1), out2.shape
    assert jnp.allclose(out2, ref2, atol=1e-5, rtol=1e-5)

    print("KERNEL_OK")
</pallas_src>

<mosaic_0001>
module attributes {stable_mosaic.version = 11 : i64} {
  func.func @_path_length_kernel(%arg0: i32, %arg1: memref<8x48xf32, #tpu.memory_space<vmem>>, %arg2: memref<1x8xf32, #tpu.memory_space<vmem>>) attributes {dimension_semantics = [#tpu.dimension_semantics<parallel>], iteration_bounds = array<i64: 1>, scalar_prefetch = 0 : i64, scratch_operands = 0 : i64, tpu.core_type = #tpu.core_type<tc>, window_params = [{transform_indices = @transform_0, window_bounds = array<i64: 8, 48>}, {transform_indices = @transform_1, window_bounds = array<i64: 1, 8>}]} {
    %c0 = arith.constant 0 : index
    %c0_0 = arith.constant 0 : index
    %0 = vector.load %arg1[%c0, %c0_0] : memref<8x48xf32, #tpu.memory_space<vmem>>, vector<8x16xf32>
    %c0_1 = arith.constant 0 : index
    %c16 = arith.constant 16 : index
    %1 = vector.load %arg1[%c0_1, %c16] : memref<8x48xf32, #tpu.memory_space<vmem>>, vector<8x16xf32>
    %2 = vector.extract_strided_slice %0 {offsets = [0, 1], sizes = [8, 15], strides = [1, 1]} : vector<8x16xf32> to vector<8x15xf32>
    %3 = vector.extract_strided_slice %0 {offsets = [0, 0], sizes = [8, 15], strides = [1, 1]} : vector<8x16xf32> to vector<8x15xf32>
    %4 = arith.subf %2, %3 : vector<8x15xf32>
    %5 = vector.extract_strided_slice %1 {offsets = [0, 1], sizes = [8, 15], strides = [1, 1]} : vector<8x16xf32> to vector<8x15xf32>
    %6 = vector.extract_strided_slice %1 {offsets = [0, 0], sizes = [8, 15], strides = [1, 1]} : vector<8x16xf32> to vector<8x15xf32>
    %7 = arith.subf %5, %6 : vector<8x15xf32>
    %8 = arith.mulf %4, %4 : vector<8x15xf32>
    %9 = arith.mulf %7, %7 : vector<8x15xf32>
    %10 = arith.addf %8, %9 : vector<8x15xf32>
    %cst = arith.constant dense<0.000000e+00> : vector<8xf32>
    %11 = vector.multi_reduction <add>, %10, %cst [1] : vector<8x15xf32> to vector<8xf32>
    %12 = vector.shape_cast %11 : vector<8xf32> to vector<1x8xf32>
    %c0_2 = arith.constant 0 : index
    %c0_3 = arith.constant 0 : index
    %13 = vector.load %arg2[%c0_2, %c0_3] : memref<1x8xf32, #tpu.memory_space<vmem>>, vector<1x8xf32>
    tpu.vector_store %arg2[%c0_2, %c0_3], %12 {strides = array<i32>} : memref<1x8xf32, #tpu.memory_space<vmem>>, vector<1x8xf32>,
    return
  }
  func.func @transform_0(%arg0: i32) -> (i32, i32) {
    %c0_i32 = arith.constant 0 : i32
    %c0_i32_0 = arith.constant 0 : i32
    return %arg0, %c0_i32 : i32, i32
  }
  func.func @transform_1(%arg0: i32) -> (i32, i32) {
    %c0_i32 = arith.constant 0 : i32
    %c0_i32_0 = arith.constant 0 : i32
    return %c0_i32, %arg0 : i32, i32
  }
}

</mosaic_0001>

<llo_original>
// kernel: tpu_custom_call.1
$region0: #{tpu_custom_call.1}
  #allocation0 [shape = 'u32[]', space=smem, size = 0x4, offset = 0x4, fixed_abs, tag = 'smem constant byte address 0x4 - core index']
  #allocation1 [shape = 'u32[72,128]{1,0:T(1,128)}', space=vmem, size = 0x9000, scoped, tag = 'internal scratch']
  %s0 = inlined_call_operand.hbm [shape: f32[8,48], index: 0, kind: input, shape index: {}]
  %s1 = inlined_call_operand.hbm [shape: f32[1,8], index: 1, kind: output, shape index: {}]
  %s2 = sld [smem:[#allocation0]]
  $region18: #{tpu_custom_call.1} parent=0
    _
  %s4 = ssub.s32 1, %s2
  %s5 = scalar_select 0, %s4, %s2
  $region1: #{tpu_custom_call.1} parent=0
    #allocation2 [shape = 'u8[4096]{0}', space=vmem, size = 0x1000, scoped, tag = 'input window, operand 0, single buffered']
    #allocation3 [shape = 's32[1]{0}', space=sflag, size = 0x4, scoped, tag = 'scoped memory for tpu_custom_call.1']
    #allocation4 [shape = 's32[1]{0}', space=sflag, size = 0x4, scoped, tag = 'scoped memory for tpu_custom_call.1']
    #allocation5 [shape = 'u8[512]{0}', space=vmem, size = 0x400, scoped, tag = 'output window, operand 0, single buffered']
    %6 = vsyncpa [#allocation3], 0
    %7 = vsyncpa [#allocation4], 0
    // Predicated region
    $region2: #{tpu_custom_call.1} parent=1 // pred_check
      _
    $region3: #{tpu_custom_call.1} parent=1 // pred_check_branch
      %9 = sbr.rel (0) target = $region5
    $region4: #{tpu_custom_call.1} parent=1 // pred_region
      %11 = vsyncadd [#allocation3], 0
      %s13 = sshll.u32 %s0, 4
      %s14 = int_to_ptr.hbm [resolvable:$true] %s13
      %s15 = sshll.u32 [#allocation2], 4
      %s16 = int_to_ptr.vmem [resolvable:$true] %s15
      %18 = dma.hbm_to_vmem [thread:$0]  %s14, 128, %s16, [#allocation3]
    $region5: #{tpu_custom_call.1} parent=1 // pred_fallthru
      _
    // Predicated region
    $region6: #{tpu_custom_call.1} parent=1 // pred_check
      _
    $region7: #{tpu_custom_call.1} parent=1 // pred_check_branch
      %20 = sbr.rel (0) target = $region9
    $region8: #{tpu_custom_call.1} parent=1 // pred_region
      %22 = dma.done [#allocation3], 128
    $region9: #{tpu_custom_call.1} parent=1 // pred_fallthru
      _
    %v23 = vld [vmem:[#allocation2] sm:$0xff]
    %25 = vrot.lane.b32.xlu0 %v23, 1
    %v26 = vpop.permute.xlu0 %25
    %v28 = vsub.f32 %v23, %v26
    %v29 = vmul.f32 %v28, %v28
    %31 = vrot.lane.b32.xlu0 %v29, 112
    %v32 = vpop.permute.xlu0 %31
    %v34 = vadd.f32 %v29, %v32
    %36 = vrot.lane.b32.xlu0 %v34, 127
    %v37 = vpop.permute.xlu0 %36
    %vm39 = vcmask 121856
    %v40 = vsel %vm39, %v37, 0.0
    %41 = vadd.xlane.f32.xlu0 %v40
    %v42 = vpop.xlane.xlu0 %41
    %v44 = vlaneseq
    %v45 = vand.u32 %v44, 127
    %v46 = vperm.slane %v42, %v45
    %vm48 = vcmask 57344
    %49 = vst.msk [vmem:[#allocation5] sm:$0x1] %vm48, %v46
    // Predicated region
    $region10: #{tpu_custom_call.1} parent=1 // pred_check
      _
    $region11: #{tpu_custom_call.1} parent=1 // pred_check_branch
      %51 = sbr.rel (0) target = $region13
    $region12: #{tpu_custom_call.1} parent=1 // pred_region
      %53 = vsyncadd [#allocation4], 0
      %s55 = sshll.u32 [#allocation5], 4
      %s56 = int_to_ptr.vmem [resolvable:$true] %s55
      %s57 = sshll.u32 %s1, 4
      %s58 = int_to_ptr.hbm [resolvable:$true] %s57
      %60 = dma.vmem_to_hbm [thread:$0]  %s56, 16, %s58, [#allocation4]
    $region13: #{tpu_custom_call.1} parent=1 // pred_fallthru
      _
    // Predicated region
    $region14: #{tpu_custom_call.1} parent=1 // pred_check
      _
    $region15: #{tpu_custom_call.1} parent=1 // pred_check_branch
      %62 = sbr.rel (0) target = $region17
    $region16: #{tpu_custom_call.1} parent=1 // pred_region
      %64 = dma.done [#allocation4], 16
    $region17: #{tpu_custom_call.1} parent=1 // pred_fallthru
      _
    %65 = vsyncpa [#allocation3], 1
    %66 = vsyncpa [#allocation4], 1

</llo_original>
